<compile_context>
chip_gen: v7x
topology: tpu7x:2x2x1
jax: 0.10.0
libtpu: 0.0.40
codegen_flags: <defaults>
</compile_context>

<pallas_src>
import math

import jax
import jax.numpy as jnp
from jax.experimental import pallas as pl
from jax.experimental.pallas import tpu as pltpu


def _get_slopes(n_head: int):
    # Matches the torch module exactly (including the truncation behaviour for
    # non-power-of-2 n_head).
    def get_slopes_power_of_2(n):
        start = 2 ** (-8 / n)
        ratio = start
        return [start * ratio ** i for i in range(n)]

    if math.log2(n_head).is_integer():
        return get_slopes_power_of_2(n_head)
    else:
        closest_power_of_2 = 2 ** math.ceil(math.log2(n_head))
        return get_slopes_power_of_2(closest_power_of_2)[:n_head]


def _alibi_mask_kernel(slopes_ref, out_ref):
    # out_ref block: (1, TQ, S) for head h = program_id(0), q-tile program_id(1)
    h = pl.program_id(0)
    q = pl.program_id(1)
    slope = slopes_ref[h]                                  # scalar from SMEM
    tq, s_k = out_ref.shape[1], out_ref.shape[2]

    rows = jax.lax.broadcasted_iota(jnp.int32, (tq, s_k), 0)  # local query idx
    cols = jax.lax.broadcasted_iota(jnp.int32, (tq, s_k), 1)  # key idx j
    # dist[i_local, j] = j - (i_local + q*TQ); scalar offset folded into one sub
    dist = (cols - rows) - q * tq
    bias = slope * dist.astype(jnp.float32)
    # causal: j > i  <=>  dist > 0  ->  -inf (matches torch triu(-inf, diag=1))
    mask = jnp.where(dist > 0, -jnp.inf, bias)
    out_ref[0] = mask.astype(out_ref.dtype)


def _choose_tq(seq_len: int, dtype_bytes: int,
               vmem_budget_bytes: int = 24 * 1024 * 1024) -> int:
    """Largest query-tile height that (a) divides S, (b) is a multiple of 8
    (or equals S), and (c) keeps the double-buffered output block under a
    conservative scoped-VMEM budget valid on v5e/v6e/v7x."""
    max_rows = vmem_budget_bytes // (2 * seq_len * dtype_bytes)
    if seq_len <= max_rows:
        return seq_len
    best = None
    tq = 8
    while tq <= max_rows:
        if seq_len % tq == 0:
            best = tq
        tq += 8
    return best if best is not None else seq_len


def build_alibi_mask(n_head: int, max_sequence_length: int,
                     dtype=jnp.float32, tq: int | None = None) -> jax.Array:
    """Returns the full (n_head, S, S) alibi mask, computed in Pallas."""
    slopes = jnp.asarray(_get_slopes(n_head), dtype=jnp.float32)
    S = max_sequence_length
    dtype = jnp.dtype(dtype)
    if tq is None:
        tq = _choose_tq(S, dtype.itemsize)
    assert S % tq == 0, (S, tq)

    total_bytes = n_head * S * S * dtype.itemsize + n_head * 4
    cost = pl.CostEstimate(flops=3 * n_head * S * S,
                           transcendentals=0,
                           bytes_accessed=total_bytes)

    return pl.pallas_call(
        _alibi_mask_kernel,
        out_shape=jax.ShapeDtypeStruct((n_head, S, S), dtype),
        grid_spec=pltpu.PrefetchScalarGridSpec(
            num_scalar_prefetch=1,          # slopes -> SMEM, read per head
            grid=(n_head, S // tq),
            in_specs=[],
            out_specs=pl.BlockSpec((1, tq, S), lambda h, q, slopes: (h, q, 0)),
        ),
        compiler_params=pltpu.CompilerParams(
            dimension_semantics=("parallel", "parallel")),
        cost_estimate=cost,
    )(slopes)


class AlibiMask:
    """JAX/Pallas port of the torch AlibiMask module."""

    def __init__(self, n_head: int, max_sequence_length: int,
                 dtype=jnp.float32, **kwargs):
        self.n_head = n_head
        self.max_sequence_length = max_sequence_length
        self.slopes = _get_slopes(n_head)
        self.mask = build_alibi_mask(n_head, max_sequence_length, dtype=dtype)

    def __call__(self, query_len: int, key_len: int):
        if (query_len > self.max_sequence_length
                or key_len > self.max_sequence_length):
            raise ValueError(
                "Query or key length exceeds max_sequence_length for AlibiMask.")
        return self.mask[:, :query_len, :key_len]


def _reference_alibi_mask(n_head: int, seq_len: int) -> jnp.ndarray:
    """Pure-JAX reference mirroring the torch construction."""
    slopes = jnp.asarray(_get_slopes(n_head), dtype=jnp.float32)[:, None, None]
    i = jnp.arange(seq_len)
    dist = (i[None, :] - i[:, None]).astype(jnp.float32)       # [i, j] = j - i
    causal = jnp.where(i[None, :] > i[:, None], -jnp.inf, 0.0)
    return slopes * dist[None] + causal[None]


def _check(out, ref):
    assert out.shape == ref.shape, (out.shape, ref.shape)
    assert bool(jnp.array_equal(jnp.isinf(out), jnp.isinf(ref)))
    finite = jnp.isfinite(ref)
    assert bool(jnp.allclose(jnp.where(finite, out.astype(jnp.float32), 0.0),
                             jnp.where(finite, ref, 0.0),
                             atol=1e-6))


if __name__ == "__main__":
    # (PRNGKey unused — slopes are deterministic by formula — kept for harness
    #  consistency.)
    _ = jax.random.PRNGKey(0)

    # Test 1: small shapes via the module API (single-tile path).
    n_head, max_seq = 4, 16
    query_len, key_len = 8, 8
    module = AlibiMask(n_head, max_seq)
    out = jax.block_until_ready(module(query_len, key_len))
    ref = _reference_alibi_mask(n_head, max_seq)[:, :query_len, :key_len]
    assert out.dtype == jnp.float32
    _check(out, ref)

    # Test 2: non-power-of-2 heads + multi-tile query grid (exercises the
    # q-tile row offset and tiled writeback).
    n_head2, max_seq2, tq2 = 6, 128, 32
    full = jax.block_until_ready(
        build_alibi_mask(n_head2, max_seq2, tq=tq2))
    ref2 = _reference_alibi_mask(n_head2, max_seq2)
    _check(full, ref2)

    print("KERNEL_OK")
</pallas_src>

<mosaic_0001>
module attributes {stable_mosaic.version = 11 : i64} {
  func.func @_alibi_mask_kernel(%arg0: i32, %arg1: i32, %arg2: memref<4xf32, #tpu.memory_space<smem>>, %arg3: memref<1x16x16xf32, #tpu.memory_space<vmem>>) attributes {dimension_semantics = [#tpu.dimension_semantics<parallel>, #tpu.dimension_semantics<parallel>], iteration_bounds = array<i64: 4, 1>, scalar_prefetch = 1 : i64, scratch_operands = 0 : i64, tpu.core_type = #tpu.core_type<tc>, window_params = [{transform_indices = @transform_0, window_bounds = array<i64: 1, 16, 16>}]} {
    %0 = arith.index_cast %arg0 : i32 to index
    %1 = memref.load %arg2[%0] : memref<4xf32, #tpu.memory_space<smem>>
    %2 = tpu.iota {dimensions = array<i32: 0>} : vector<16x16xi32>
    %3 = tpu.iota {dimensions = array<i32: 1>} : vector<16x16xi32>
    %4 = arith.subi %3, %2 : vector<16x16xi32>
    %c16_i32 = arith.constant 16 : i32
    %5 = arith.muli %arg1, %c16_i32 : i32
    %6 = vector.broadcast %5 : i32 to vector<16x16xi32>
    %7 = arith.subi %4, %6 : vector<16x16xi32>
    %8 = arith.sitofp %7 : vector<16x16xi32> to vector<16x16xf32>
    %9 = vector.broadcast %1 : f32 to vector<16x16xf32>
    %10 = arith.mulf %9, %8 : vector<16x16xf32>
    %c0_i32 = arith.constant 0 : i32
    %11 = vector.broadcast %c0_i32 : i32 to vector<16x16xi32>
    %12 = arith.cmpi sgt, %7, %11 : vector<16x16xi32>
    %cst = arith.constant 0xFF800000 : f32
    %13 = vector.broadcast %cst : f32 to vector<16x16xf32>
    %14 = arith.select %12, %13, %10 : vector<16x16xi1>, vector<16x16xf32>
    %c0 = arith.constant 0 : index
    %c0_0 = arith.constant 0 : index
    %c0_1 = arith.constant 0 : index
    %15 = vector.load %arg3[%c0, %c0_0, %c0_1] : memref<1x16x16xf32, #tpu.memory_space<vmem>>, vector<1x16x16xf32>
    %16 = vector.shape_cast %15 : vector<1x16x16xf32> to vector<16x16xf32>
    %17 = vector.shape_cast %14 : vector<16x16xf32> to vector<1x16x16xf32>
    tpu.vector_store %arg3[%c0, %c0_0, %c0_1], %17 {strides = array<i32>} : memref<1x16x16xf32, #tpu.memory_space<vmem>>, vector<1x16x16xf32>,
    return
  }
  func.func @transform_0(%arg0: i32, %arg1: i32, %arg2: memref<4xf32, #tpu.memory_space<smem>>) -> (i32, i32, i32) {
    %c0_i32 = arith.constant 0 : i32
    %c0_i32_0 = arith.constant 0 : i32
    return %arg0, %arg1, %c0_i32 : i32, i32, i32
  }
}

</mosaic_0001>

<llo_original>
// kernel: tpu_custom_call.1
$region0: #{tpu_custom_call.1}
  #allocation0 [shape = 'u32[]', space=smem, size = 0x4, offset = 0x4, fixed_abs, tag = 'smem constant byte address 0x4 - core index']
  #allocation1 [shape = 'u32[144,128]{1,0:T(1,128)}', space=vmem, size = 0x12000, scoped, tag = 'internal scratch']
  #allocation2 [shape = 's32[1]{0}', space=sflag, size = 0x4, scoped, tag = 'scoped memory for tpu_custom_call.1']
  #allocation3 [shape = 'u8[512]{0}', space=smem, size = 0x200, scoped, tag = 'prefetched SMEM operand 0']
  %s0 = inlined_call_operand.hbm [shape: f32[4], index: 0, kind: input, shape index: {}]
  %s1 = inlined_call_operand.hbm [shape: f32[4,16,16], index: 1, kind: output, shape index: {}]
  %s2 = sld [smem:[#allocation0]]
  $region25: #{tpu_custom_call.1} parent=0
    _
  %s4 = ssub.s32 1, %s2
  %s5 = scalar_select 0, %s4, %s2
  %7 = dma.hbm_to_smem %s0, 16, [#allocation3], [#allocation2]
  %8 = dma.done [#allocation2], 16
  %9 = sfence
  $region1: #{tpu_custom_call.1} parent=0
    #allocation4 [shape = 'u8[16384]{0}', space=vmem, size = 0x4000, scoped, tag = 'output window, operand 0']
    #allocation5 [shape = 's32[2]{0}', space=sflag, size = 0x8, scoped, tag = 'scoped memory for tpu_custom_call.1']
    %10 = vsyncpa [#allocation5], 0
    %s11 = scalar_lea.sflag [#allocation5], 1
    %12 = vsyncpa %s11, 0
    loop: start=0, step=1, limit=5
    $region2: #{tpu_custom_call.1} parent=1 // loop_pre_header
      _
    $region3: #{tpu_custom_call.1} parent=1 // loop_header
      %s14 = sphi 0, %s18
      %p15 = scmp.ge.s32.totalorder %s14, 5
      %s20 = sphi 0, %s30
      %s21 = sphi 0, %s26
      %s22 = sphi 0, %s20
      %s23 = sphi 0, %s21
      %s35 = sphi 0, %s37
      %s38 = sphi 0, %s35
      %s48 = sphi 0, %s38
    $region4: #{tpu_custom_call.1} parent=1 // loop_header_branch
      %17 = sbr.rel (%p15) target = $region8
    $region5: #{tpu_custom_call.1} parent=1 // loop_body
      %s19 = ssub.s32 %s14, 1
      %s24 = sadd.s32 1, %s21
      %p25 = scmp.ge.s32.totalorder %s24, 1
      %s26 = scalar_select %p25, 0, %s24
      %s27 = sadd.s32 1, %s20
      %s28 = scalar_select %p25, %s27, %s20
      %p29 = scmp.ge.s32.totalorder %s28, 4
      %s30 = scalar_select %p29, 0, %s28
      %s31 = ssub.s32 %s20, %s30
      %s32 = ssub.s32 %s21, %s26
      %s33 = sor.u32 %s31, %s32
      %p34 = scmp.eq.s32.totalorder %s33, 0
      %s36 = sadd.s32 %s35, 1
      %s37 = scalar_select %p34, %s35, %s36
      %p39 = pneg %p34
      %p40 = scmp.eq.s32.totalorder %s14, 3
      %p41 = por %p39, %p40
      %p42 = scmp.ne.s32.totalorder %s35, %s38
      %p43 = scmp.eq.s32.totalorder %s14, 0
      %p44 = por %p42, %p43
      %p45 = scmp.ne.s32.totalorder %s35, %s38
      %p46 = scmp.eq.s32.totalorder %s19, 3
      %p47 = por %p45, %p46
      %p49 = scmp.ne.s32.totalorder %s38, %s48
      %p50 = scmp.eq.s32.totalorder %s19, 0
      %p51 = por %p49, %p50
      %p52 = scmp.lt.s32.totalorder %s14, 4
      // Predicated region
      $region9: #{tpu_custom_call.1} parent=5 // pred_check
        %p53 = pneg %p52
      $region10: #{tpu_custom_call.1} parent=5 // pred_check_branch
        %55 = sbr.rel (%p53) target = $region12
      $region11: #{tpu_custom_call.1} parent=5 // pred_region
        %p56 = pneg %p44
        %p57 = pneg %p41
        %s58 = sand.u32 %s35, 1
        %s59 = scalar_lea.sflag [#allocation5], %s58
        %s60 = sand.u32 %s35, 1
        %s61 = smul.addr %s60, 16
        %s62 = scalar_lea.vmem [#allocation4], %s61
        %s63 = smul.u32 2, %s21
        %s64 = sld [smem:[#allocation3 + %s20]]
        %v65 = vlaneseq
        %v66 = vshrl.u32 %v65, 7
        %v67 = vadd.s32 %v66, 8
        %v68 = vlaneseq
        %v69 = vand.u32 %v68, 127
        %v70 = vsub.s32 %v69, %v66
        %v71 = vsub.s32 %v69, %v67
        %s72 = smul.u32 %s21, 16
        %v73 = vstv %s72
        %v74 = vsub.s32 %v70, %v73
        %v75 = vsub.s32 %v71, %v73
        %v76 = vcvt.s32.f32 %v74
        %v77 = vcvt.s32.f32 %v75
        %v78 = vstv %s64
        %v79 = vmul.f32 %v78, %v76
        %v80 = vmul.f32 %v78, %v77
        %vm81 = vcmp.gt.s32.totalorder %v74, 0
        %vm82 = vcmp.gt.s32.totalorder %v75, 0
        %v83 = vsel %vm81, -inf, %v79
        %v84 = vsel %vm82, -inf, %v80
        %vm85 = vcmask 130048
        %86 = vst.msk [vmem:[%s62] sm:$0xff] %vm85, %v83
        %87 = vst.msk [vmem:[%s62 + $0x8] sm:$0xff] %vm85, %v84
        %s88 = sand.u32 %s35, 1
        %s89 = scalar_lea.sflag [#allocation5], %s88
        %s90 = sand.u32 %s35, 1
        %s91 = smul.addr %s90, 16
        %s92 = scalar_lea.vmem [#allocation4], %s91
        // Predicated region
        $region13: #{tpu_custom_call.1} parent=11 // pred_check
          %p93 = pneg %p41
        $region14: #{tpu_custom_call.1} parent=11 // pred_check_branch
          %95 = sbr.rel (%p93) target = $region16
        $region15: #{tpu_custom_call.1} parent=11 // pred_region
          %s96 = smul.u32 2, %s21
          %s98 = ssub.s32 256, 256
          %99 = vsyncadd %s89, %s98
          %s100 = smul.addr %s20, 2
          %s101 = sadd.s32 %s96, %s100
          %s102 = smul.addr %s101, 128
          %s103 = scalar_lea.hbm %s1, %s102
          %s104 = sshll.u32 %s92, 4
          %s105 = int_to_ptr.vmem [resolvable:$true] %s104
          %110 = dma.vmem_to_hbm [thread:$0]  %s105, 256, %s103, %s89, 128, 128, 8
        $region16: #{tpu_custom_call.1} parent=11 // pred_fallthru
          _
      $region12: #{tpu_custom_call.1} parent=5 // pred_fallthru
        _
      %p111 = scmp.le.s32.totalorder 1, %s14
      // Predicated region
      $region17: #{tpu_custom_call.1} parent=5 // pred_check
        %p112 = pneg %p111
      $region18: #{tpu_custom_call.1} parent=5 // pred_check_branch
        %114 = sbr.rel (%p112) target = $region20
      $region19: #{tpu_custom_call.1} parent=5 // pred_region
        %s115 = ssub.s32 %s14, 1
        // Predicated region
        $region21: #{tpu_custom_call.1} parent=19 // pred_check
          %p116 = pneg %p47
        $region22: #{tpu_custom_call.1} parent=19 // pred_check_branch
          %118 = sbr.rel (%p116) target = $region24
        $region23: #{tpu_custom_call.1} parent=19 // pred_region
          %s119 = sand.u32 %s38, 1
          %s120 = scalar_lea.sflag [#allocation5], %s119
          %s121 = sand.u32 %s38, 1
          %s122 = smul.addr %s121, 16
          %s123 = scalar_lea.vmem [#allocation4], %s122
          %124 = dma.done %s120, 256
        $region24: #{tpu_custom_call.1} parent=19 // pred_fallthru
          _
      $region20: #{tpu_custom_call.1} parent=5 // pred_fallthru
        _
    $region6: #{tpu_custom_call.1} parent=1 // loop_footer
      %s18 = sadd.s32 1, %s14
    $region7: #{tpu_custom_call.1} parent=1 // loop_footer_branch
      %13 = sbr.rel target = $region3
    $region8: #{tpu_custom_call.1} parent=1 // loop_exit
      _
    %125 = vsyncpa [#allocation5], 1
    %s126 = scalar_lea.sflag [#allocation5], 1
    %127 = vsyncpa %s126, 1

</llo_original>
